<compile_context>
chip_gen: v7x
topology: tpu7x:2x2x1
jax: 0.10.0
libtpu: 0.0.40
codegen_flags: <defaults>
</compile_context>

<pallas_src>
import functools

import jax
import jax.numpy as jnp
from jax.experimental import pallas as pl
from jax.experimental.pallas import tpu as pltpu


def _round_up(a, b):
    return -(-a // b) * b


def _vmem_capacity_bytes():
    """Physical VMEM per TensorCore; conservative (v7x: 64 MiB) fallback."""
    try:
        info = pltpu.get_tpu_info()
        cap = getattr(info, "vmem_capacity_bytes", None)
        if cap:
            return int(cap)
    except Exception:
        pass
    return 64 * 1024 * 1024


def _avgmax_kernel(x_ref, o_ref, *, scale, use_mxu_sum):
    # Single-pass sum + max over the full HW row; scale = 0.5 / HW.
    x = x_ref[...].astype(jnp.float32)
    if use_mxu_sum:
        # Small-HW regime: push the row-sum onto the otherwise-idle MXU as a
        # matvec so the XLU only has to do the max reduction.
        ones = jnp.ones((x.shape[-1], 1), jnp.float32)
        s = jnp.dot(x, ones, preferred_element_type=jnp.float32)
    else:
        s = jnp.sum(x, axis=-1, keepdims=True)
    m = jnp.max(x, axis=-1, keepdims=True)
    o_ref[...] = (scale * s + 0.5 * m).astype(o_ref.dtype)


def _avgmax_chunked_kernel(x_ref, o_ref, sum_sc, max_sc, *, scale, hw, tk, ragged):
    # Grid: (row tiles [parallel], HW chunks [arbitrary, last]).
    k = pl.program_id(1)
    nk = pl.num_programs(1)

    @pl.when(k == 0)
    def _init():
        sum_sc[...] = jnp.zeros_like(sum_sc)
        max_sc[...] = jnp.full_like(max_sc, -jnp.inf)

    x = x_ref[...].astype(jnp.float32)

    def _accum(xs, xm):
        sum_sc[...] = sum_sc[...] + jnp.sum(xs, axis=-1, keepdims=True)
        max_sc[...] = jnp.maximum(max_sc[...], jnp.max(xm, axis=-1, keepdims=True))

    if ragged:
        is_last = k == nk - 1

        @pl.when(k < nk - 1)
        def _full_chunk():
            _accum(x, x)

        @pl.when(is_last)
        def _ragged_chunk():
            # Only the last chunk can be ragged: columns >= HW hold stale VMEM
            # garbage (no wrapper-side padding), so mask them out.  (1, TK)
            # iota broadcasts against the (TM, TK) tile.
            col = k * tk + jax.lax.broadcasted_iota(jnp.int32, (1, tk), 1)
            valid = col < hw
            _accum(jnp.where(valid, x, 0.0), jnp.where(valid, x, -jnp.inf))
    else:
        _accum(x, x)

    @pl.when(k == nk - 1)
    def _finalize():
        o_ref[...] = (scale * sum_sc[...] + 0.5 * max_sc[...]).astype(o_ref.dtype)


def adaptive_avgmax_pool2d(x, output_size=1, *, _force_chunked=False, _force_pallas=False):
    """Pallas equivalent of 0.5*(adaptive_avg_pool2d(x,1)+adaptive_max_pool2d(x,1))."""
    # TODO(synk): general output_size > 1 (non-global adaptive pooling) not implemented.
    assert output_size == 1, "only output_size=1 (global pooling) supported"
    assert jnp.issubdtype(x.dtype, jnp.floating), "floating dtypes only (matches PyTorch)"

    N, C, H, W = x.shape
    NC, HW = N * C, H * W
    itemsize = jnp.dtype(x.dtype).itemsize

    # Tiny-input fallback: pallas_call / grid setup overhead dominates below a
    # few MB and XLA's fused reduction is already at roofline there.
    if not (_force_pallas or _force_chunked) and NC * HW * itemsize < (2 << 20):
        return 0.5 * (jnp.mean(x, axis=(2, 3), keepdims=True)
                      + jnp.max(x, axis=(2, 3), keepdims=True))

    # Sublane packing: 8 rows/vreg for f32, 16 for bf16, 32 for 8-bit types.
    sub = max(8, 32 // itemsize)
    scale = 0.5 / float(HW)
    x2 = x.reshape(NC, HW)

    # --- generation-aware VMEM budgeting ---
    vmem_phys = _vmem_capacity_bytes()       # 128 MiB v5e/v6e, 64 MiB v7x
    vmem_budget = vmem_phys // 2             # target for double-buffered blocks
    vmem_limit = (vmem_phys * 3) // 4        # scoped limit we request

    TM_CAP = 16384
    # Keep >= ~4 row tiles when NC allows so the "parallel" row axis actually
    # shards across both of v7x's TensorCores (free on v5e/v6e).
    tm_split = _round_up(max(1, -(-NC // 4)), sub)

    out_row_bytes = 128 * itemsize           # (TM, 1) out block pads to a lane group

    cost = pl.CostEstimate(
        flops=2 * NC * HW,
        transcendentals=0,
        bytes_accessed=NC * HW * itemsize + NC * itemsize,
    )

    # Single-axis candidate: one block holds the full HW row.
    in_row_bytes = _round_up(HW, 128) * itemsize     # VMEM lane padding
    tm_vmem = (vmem_budget // (2 * in_row_bytes + 2 * out_row_bytes)) // sub * sub

    use_single = (not _force_chunked) and tm_vmem >= min(128, _round_up(NC, sub))

    if use_single:
        TM = max(sub, min(tm_vmem, tm_split, TM_CAP))
        if TM > NC:
            TM = NC   # full-dim row block (always legal)

        out = pl.pallas_call(
            functools.partial(_avgmax_kernel, scale=scale, use_mxu_sum=(HW <= 128)),
            out_shape=jax.ShapeDtypeStruct((NC, 1), x.dtype),
            grid=(pl.cdiv(NC, TM),),
            in_specs=[pl.BlockSpec((TM, HW), lambda i: (i, 0))],
            out_specs=pl.BlockSpec((TM, 1), lambda i: (i, 0)),
            compiler_params=pltpu.CompilerParams(
                dimension_semantics=("parallel",),
                vmem_limit_bytes=vmem_limit,
            ),
            cost_estimate=cost,
        )(x2)
    else:
        # Chunked-HW path: stream HW in TK-sized chunks, keep TM large.
        TK_TARGET = 128 if _force_chunked else 8192
        TK = min(_round_up(HW, 128), TK_TARGET)
        nk = pl.cdiv(HW, TK)
        ragged = (HW % TK) != 0

        in_blk_bytes = TK * itemsize
        scr_row_bytes = 2 * 128 * 4   # two (TM, 1) f32 scratch accumulators
        tm_vmem_c = vmem_budget // (2 * in_blk_bytes + 2 * out_row_bytes + scr_row_bytes)
        tm_vmem_c = (tm_vmem_c // sub) * sub
        TM = max(sub, min(tm_vmem_c, tm_split, TM_CAP))
        if TM > NC:
            TM = NC

        out = pl.pallas_call(
            functools.partial(_avgmax_chunked_kernel,
                              scale=scale, hw=HW, tk=TK, ragged=ragged),
            out_shape=jax.ShapeDtypeStruct((NC, 1), x.dtype),
            grid=(pl.cdiv(NC, TM), nk),
            in_specs=[pl.BlockSpec((TM, TK), lambda i, k: (i, k))],
            out_specs=pl.BlockSpec((TM, 1), lambda i, k: (i, 0)),
            scratch_shapes=[pltpu.VMEM((TM, 1), jnp.float32),
                            pltpu.VMEM((TM, 1), jnp.float32)],
            compiler_params=pltpu.CompilerParams(
                dimension_semantics=("parallel", "arbitrary"),
                vmem_limit_bytes=vmem_limit,
            ),
            cost_estimate=cost,
        )(x2)

    return out.reshape(N, C, 1, 1)


class AdaptiveAvgMaxPool2d:
    """JAX/Pallas port of the PyTorch AdaptiveAvgMaxPool2d module."""

    def __init__(self, output_size=1):
        self.output_size = output_size

    def __call__(self, x):
        return adaptive_avgmax_pool2d(x, self.output_size)


if __name__ == "__main__":
    key = jax.random.PRNGKey(0)
    x = jax.random.normal(key, (2, 4, 16, 16), dtype=jnp.float32)

    ref = 0.5 * (jnp.mean(x, axis=(2, 3), keepdims=True)
                 + jnp.max(x, axis=(2, 3), keepdims=True))

    # Single-axis Pallas path (forced past the tiny-input fallback).
    y = jax.block_until_ready(adaptive_avgmax_pool2d(x, 1, _force_pallas=True))
    assert y.shape == (2, 4, 1, 1)
    assert jnp.allclose(y, ref, atol=1e-5, rtol=1e-5)

    # Chunked-HW reduction path (used for large H*W): multi-chunk accumulate.
    y2 = jax.block_until_ready(adaptive_avgmax_pool2d(x, 1, _force_chunked=True))
    assert jnp.allclose(y2, ref, atol=1e-5, rtol=1e-5)

    # Chunked path with a ragged (masked) last HW chunk and ragged row tiles.
    xr = jax.random.normal(jax.random.PRNGKey(2), (1, 3, 16, 10), dtype=jnp.float32)
    refr = 0.5 * (jnp.mean(xr, axis=(2, 3), keepdims=True)
                  + jnp.max(xr, axis=(2, 3), keepdims=True))
    yr = jax.block_until_ready(adaptive_avgmax_pool2d(xr, 1, _force_chunked=True))
    assert jnp.allclose(yr, refr, atol=1e-5, rtol=1e-5)

    # Small-HW (<=128) MXU-matvec path with ragged row edge block.
    x3 = jax.random.normal(jax.random.PRNGKey(1), (2, 5, 7, 7), dtype=jnp.float32)
    ref3 = 0.5 * (jnp.mean(x3, axis=(2, 3), keepdims=True)
                  + jnp.max(x3, axis=(2, 3), keepdims=True))
    y3 = jax.block_until_ready(adaptive_avgmax_pool2d(x3, 1, _force_pallas=True))
    assert jnp.allclose(y3, ref3, atol=1e-5, rtol=1e-5)

    # Module wrapper (default path; tiny inputs use the fused XLA fallback).
    mod = AdaptiveAvgMaxPool2d(output_size=1)
    y4 = jax.block_until_ready(mod(x))
    assert jnp.allclose(y4, ref, atol=1e-5, rtol=1e-5)

    print("KERNEL_OK")
</pallas_src>

<mosaic_0001>
module attributes {stable_mosaic.version = 11 : i64} {
  func.func @_avgmax_kernel(%arg0: i32, %arg1: memref<8x256xf32, #tpu.memory_space<vmem>>, %arg2: memref<8x1xf32, #tpu.memory_space<vmem>>) attributes {dimension_semantics = [#tpu.dimension_semantics<parallel>], iteration_bounds = array<i64: 1>, scalar_prefetch = 0 : i64, scratch_operands = 0 : i64, tpu.core_type = #tpu.core_type<tc>, window_params = [{transform_indices = @transform_0, window_bounds = array<i64: 8, 256>}, {transform_indices = @transform_1, window_bounds = array<i64: 8, 1>}]} {
    %c0 = arith.constant 0 : index
    %c0_0 = arith.constant 0 : index
    %0 = vector.load %arg1[%c0, %c0_0] : memref<8x256xf32, #tpu.memory_space<vmem>>, vector<8x256xf32>
    %cst = arith.constant dense<0.000000e+00> : vector<8xf32>
    %1 = vector.multi_reduction <add>, %0, %cst [1] : vector<8x256xf32> to vector<8xf32>
    %2 = vector.shape_cast %1 : vector<8xf32> to vector<8x1xf32>
    %cst_1 = arith.constant dense<0xFF800000> : vector<8xf32>
    %3 = vector.multi_reduction <maximumf>, %0, %cst_1 [1] : vector<8x256xf32> to vector<8xf32>
    %4 = vector.shape_cast %3 : vector<8xf32> to vector<8x1xf32>
    %cst_2 = arith.constant 0.001953125 : f32
    %5 = vector.broadcast %cst_2 : f32 to vector<8x1xf32>
    %6 = arith.mulf %5, %2 : vector<8x1xf32>
    %cst_3 = arith.constant 5.000000e-01 : f32
    %7 = vector.broadcast %cst_3 : f32 to vector<8x1xf32>
    %8 = arith.mulf %7, %4 : vector<8x1xf32>
    %9 = arith.addf %6, %8 : vector<8x1xf32>
    %c0_4 = arith.constant 0 : index
    %c0_5 = arith.constant 0 : index
    %10 = vector.load %arg2[%c0_4, %c0_5] : memref<8x1xf32, #tpu.memory_space<vmem>>, vector<8x1xf32>
    tpu.vector_store %arg2[%c0_4, %c0_5], %9 {strides = array<i32>} : memref<8x1xf32, #tpu.memory_space<vmem>>, vector<8x1xf32>,
    return
  }
  func.func @transform_0(%arg0: i32) -> (i32, i32) {
    %c0_i32 = arith.constant 0 : i32
    %c0_i32_0 = arith.constant 0 : i32
    return %arg0, %c0_i32 : i32, i32
  }
  func.func @transform_1(%arg0: i32) -> (i32, i32) {
    %c0_i32 = arith.constant 0 : i32
    %c0_i32_0 = arith.constant 0 : i32
    return %arg0, %c0_i32 : i32, i32
  }
}

</mosaic_0001>

<llo_original>
// kernel: tpu_custom_call.1
$region0: #{tpu_custom_call.1}
  #allocation0 [shape = 'u32[]', space=smem, size = 0x4, offset = 0x4, fixed_abs, tag = 'smem constant byte address 0x4 - core index']
  #allocation1 [shape = 'u32[144,128]{1,0:T(1,128)}', space=vmem, size = 0x12000, scoped, tag = 'internal scratch']
  %s0 = inlined_call_operand.hbm [shape: f32[8,256], index: 0, kind: input, shape index: {}]
  %s1 = inlined_call_operand.vmem [shape: f32[8,1], index: 1, kind: output, shape index: {}]
  %s2 = sld [smem:[#allocation0]]
  $region18: #{tpu_custom_call.1} parent=0
    _
  %s4 = ssub.s32 1, %s2
  %s5 = scalar_select 0, %s4, %s2
  $region1: #{tpu_custom_call.1} parent=0
    #allocation2 [shape = 'u8[8192]{0}', space=vmem, size = 0x2000, scoped, tag = 'input window, operand 0, single buffered']
    #allocation3 [shape = 's32[1]{0}', space=sflag, size = 0x4, scoped, tag = 'scoped memory for tpu_custom_call.1']
    %6 = vsyncpa [#allocation3], 0
    // Predicated region
    $region2: #{tpu_custom_call.1} parent=1 // pred_check
      _
    $region3: #{tpu_custom_call.1} parent=1 // pred_check_branch
      %8 = sbr.rel (0) target = $region5
    $region4: #{tpu_custom_call.1} parent=1 // pred_region
      %s10 = ssub.s32 256, 256
      %11 = vsyncadd [#allocation3], %s10
      %s13 = sshll.u32 [#allocation2], 4
      %s14 = int_to_ptr.vmem [resolvable:$true] %s13
      %16 = dma.hbm_to_vmem [thread:$0]  %s0, 256, %s14, [#allocation3]
    $region5: #{tpu_custom_call.1} parent=1 // pred_fallthru
      _
    // Predicated region
    $region6: #{tpu_custom_call.1} parent=1 // pred_check
      _
    $region7: #{tpu_custom_call.1} parent=1 // pred_check_branch
      %18 = sbr.rel (0) target = $region9
    $region8: #{tpu_custom_call.1} parent=1 // pred_region
      %19 = dma.done [#allocation3], 256
    $region9: #{tpu_custom_call.1} parent=1 // pred_fallthru
      _
    %v20 = vld [vmem:[#allocation2] sm:$0xff]
    %v21 = vld [vmem:[#allocation2 + $0x8] sm:$0xff]
    %v22 = vadd.f32 %v20, %v21
    %23 = vadd.xlane.f32.xlu0 %v22
    %v24 = vpop.xlane.xlu0 %23
    %v25 = vmax.f32 %v20, %v21
    %26 = vmax.xlane.f32.xlu0 %v25
    %v27 = vpop.xlane.xlu0 %26
    %v28 = vmul.f32 %v24, 0.001953125
    %v29 = vmul.f32 %v27, 0.5
    %v30 = vadd.f32 %v28, %v29
    %vm31 = vcmask 7168
    %32 = vst.msk [vmem:[%s1] sm:$0xff] %vm31, %v30
    // Predicated region
    $region10: #{tpu_custom_call.1} parent=1 // pred_check
      _
    $region11: #{tpu_custom_call.1} parent=1 // pred_check_branch
      %34 = sbr.rel (0) target = $region13
    $region12: #{tpu_custom_call.1} parent=1 // pred_region
      _
    $region13: #{tpu_custom_call.1} parent=1 // pred_fallthru
      _
    // Predicated region
    $region14: #{tpu_custom_call.1} parent=1 // pred_check
      _
    $region15: #{tpu_custom_call.1} parent=1 // pred_check_branch
      %36 = sbr.rel (0) target = $region17
    $region16: #{tpu_custom_call.1} parent=1 // pred_region
      _
    $region17: #{tpu_custom_call.1} parent=1 // pred_fallthru
      _
    %37 = vsyncpa [#allocation3], 1

</llo_original>
